<compile_context>
chip_gen: v7x
topology: tpu7x:2x2x1
jax: 0.10.0
libtpu: 0.0.40
codegen_flags: <defaults>
</compile_context>

<pallas_src>
import functools

import jax
import jax.numpy as jnp
from jax.experimental import pallas as pl
from jax.experimental.pallas import tpu as pltpu


def _dummy_model_kernel(alpha_ref, beta_ref, x_ref, o_ref):
    # alpha_ref / beta_ref: (rows_tile, 1) f32 in VMEM
    # x_ref / o_ref:        (rows_tile, H*W) f32 in VMEM
    x = x_ref[...]
    row_sum = jnp.sum(x, axis=-1, keepdims=True)            # XLU row-reduce
    # 1/(H*W) of the mean is pre-folded into beta -> pure FMA on the VPU.
    o_ref[...] = alpha_ref[...] * x + beta_ref[...] * row_sum


def _choose_rows_tile(n_rows, lane_elems, itemsize=4, target_bytes=2 << 20):
    """Row-tile: multiple of 8, divides n_rows, <= ~2 MiB per buffer.

    Prefers producing >= 2 grid steps so both v7x TensorCores get work.
    """
    if n_rows % 8 != 0:
        # A block dim equal to the full array extent is always legal.
        return n_rows
    candidates = [
        t for t in range(8, n_rows + 1, 8)
        if n_rows % t == 0 and t * lane_elems * itemsize <= target_bytes
    ]
    if not candidates:
        return 8
    split = [t for t in candidates if t < n_rows]
    return max(split) if split else max(candidates)


@functools.partial(jax.jit, static_argnames=("sigma_data", "image_size"))
def dummy_model_forward(x, t, *, sigma_data=1.0, image_size=64):
    """x: (B, C, H, W) float32, t: (B,) float32 -> (B, C, H, W) float32."""
    B, C, H, W = x.shape
    n_rows = B * C
    lanes = H * W

    xf = x.reshape(n_rows, lanes).astype(jnp.float32)

    # --- per-batch scalar preconditioning, hoisted out of the kernel (O(B)) ---
    sd = jnp.float32(sigma_data)
    sd2 = sd * sd
    tt = t.astype(jnp.float32)
    sigma = jnp.exp(4.0 * tt)
    sig2 = sigma * sigma
    denom = sig2 + sd2
    c_in = 1.0 / jnp.sqrt(denom)
    c_skip = sd2 / denom
    c_out = sigma * sd / jnp.sqrt(denom)
    d = sd2 / ((sigma / jnp.float32(image_size)) ** 2 + sd2)
    inv_io = 1.0 / (c_in * c_out)
    alpha = -c_skip * inv_io                       # (B,)
    beta = d * inv_io / jnp.float32(lanes)         # (B,), mean's 1/(H*W) folded in

    # Expand per-batch -> per-(b, c) row coefficients, shaped (B*C, 1).
    alpha_rows = jnp.repeat(alpha, C).reshape(n_rows, 1).astype(jnp.float32)
    beta_rows = jnp.repeat(beta, C).reshape(n_rows, 1).astype(jnp.float32)

    rows_tile = _choose_rows_tile(n_rows, lanes)
    grid = (n_rows // rows_tile,)

    # Double-buffered x + out tiles (+ tiny coefficient buffers); keep headroom.
    tile_bytes = rows_tile * lanes * 4
    vmem_limit = int(min(max(4 * tile_bytes + (2 << 20), 32 << 20), 64 << 20))

    out = pl.pallas_call(
        _dummy_model_kernel,
        out_shape=jax.ShapeDtypeStruct((n_rows, lanes), jnp.float32),
        grid_spec=pl.GridSpec(
            grid=grid,
            in_specs=[
                pl.BlockSpec((rows_tile, 1), lambda i: (i, 0)),      # alpha
                pl.BlockSpec((rows_tile, 1), lambda i: (i, 0)),      # beta
                pl.BlockSpec((rows_tile, lanes), lambda i: (i, 0)),  # x
            ],
            out_specs=pl.BlockSpec((rows_tile, lanes), lambda i: (i, 0)),
        ),
        compiler_params=pltpu.CompilerParams(
            dimension_semantics=("parallel",),
            vmem_limit_bytes=vmem_limit,
        ),
        cost_estimate=pl.CostEstimate(
            flops=4 * n_rows * lanes,
            transcendentals=0,
            bytes_accessed=2 * n_rows * lanes * 4 + 2 * n_rows * 4,
        ),
    )(alpha_rows, beta_rows, xf)

    return out.reshape(B, C, H, W)


def _reference_forward(x, t, *, sigma_data=1.0, image_size=64):
    # Pure-JAX reference mirroring the PyTorch forward exactly.
    t = t.reshape(-1, 1, 1, 1)
    sigma = jnp.exp(4.0 * t)
    sd2 = sigma_data ** 2
    c_in = 1.0 / jnp.sqrt(sigma**2 + sd2)
    c_skip = sd2 / (sigma**2 + sd2)
    c_out = sigma * sigma_data / jnp.sqrt(sigma**2 + sd2)
    original_sample = x / c_in
    x_mean = jnp.mean(original_sample, axis=(2, 3), keepdims=True)
    denoised = sd2 / ((sigma / image_size) ** 2 + sd2) * x_mean
    return (denoised - c_skip * original_sample) / c_out


if __name__ == "__main__":
    # Small shapes consistent with the module (the dummy model is channel-agnostic).
    B, C, H, W = 2, 4, 16, 16
    key = jax.random.PRNGKey(0)
    kx, kt = jax.random.split(key)
    x = jax.random.normal(kx, (B, C, H, W), dtype=jnp.float32)
    t = jax.random.uniform(kt, (B,), dtype=jnp.float32)

    out = dummy_model_forward(x, t, sigma_data=1.0, image_size=64)
    out = jax.block_until_ready(out)

    ref = _reference_forward(x, t, sigma_data=1.0, image_size=64)
    assert out.shape == (B, C, H, W)
    assert jnp.allclose(out, ref, atol=1e-4, rtol=1e-4), "mismatch vs reference"

    print("KERNEL_OK")
</pallas_src>

<mosaic_0001>
module attributes {stable_mosaic.version = 11 : i64} {
  func.func @_dummy_model_kernel(%arg0: i32, %arg1: memref<8x1xf32, #tpu.memory_space<vmem>>, %arg2: memref<8x1xf32, #tpu.memory_space<vmem>>, %arg3: memref<8x256xf32, #tpu.memory_space<vmem>>, %arg4: memref<8x256xf32, #tpu.memory_space<vmem>>) attributes {dimension_semantics = [#tpu.dimension_semantics<parallel>], iteration_bounds = array<i64: 1>, scalar_prefetch = 0 : i64, scratch_operands = 0 : i64, tpu.core_type = #tpu.core_type<tc>, window_params = [{transform_indices = @transform_0, window_bounds = array<i64: 8, 1>}, {transform_indices = @transform_1, window_bounds = array<i64: 8, 1>}, {transform_indices = @transform_2, window_bounds = array<i64: 8, 256>}, {transform_indices = @transform_3, window_bounds = array<i64: 8, 256>}]} {
    %c0 = arith.constant 0 : index
    %c0_0 = arith.constant 0 : index
    %0 = vector.load %arg3[%c0, %c0_0] : memref<8x256xf32, #tpu.memory_space<vmem>>, vector<8x256xf32>
    %cst = arith.constant dense<0.000000e+00> : vector<8xf32>
    %1 = vector.multi_reduction <add>, %0, %cst [1] : vector<8x256xf32> to vector<8xf32>
    %2 = vector.shape_cast %1 : vector<8xf32> to vector<8x1xf32>
    %c0_1 = arith.constant 0 : index
    %c0_2 = arith.constant 0 : index
    %3 = vector.load %arg1[%c0_1, %c0_2] : memref<8x1xf32, #tpu.memory_space<vmem>>, vector<8x1xf32>
    %4 = vector.broadcast %3 : vector<8x1xf32> to vector<8x256xf32>
    %5 = arith.mulf %4, %0 : vector<8x256xf32>
    %c0_3 = arith.constant 0 : index
    %c0_4 = arith.constant 0 : index
    %6 = vector.load %arg2[%c0_3, %c0_4] : memref<8x1xf32, #tpu.memory_space<vmem>>, vector<8x1xf32>
    %7 = arith.mulf %6, %2 : vector<8x1xf32>
    %8 = vector.broadcast %7 : vector<8x1xf32> to vector<8x256xf32>
    %9 = arith.addf %5, %8 : vector<8x256xf32>
    %c0_5 = arith.constant 0 : index
    %c0_6 = arith.constant 0 : index
    %10 = vector.load %arg4[%c0_5, %c0_6] : memref<8x256xf32, #tpu.memory_space<vmem>>, vector<8x256xf32>
    tpu.vector_store %arg4[%c0_5, %c0_6], %9 {strides = array<i32>} : memref<8x256xf32, #tpu.memory_space<vmem>>, vector<8x256xf32>,
    return
  }
  func.func @transform_0(%arg0: i32) -> (i32, i32) {
    %c0_i32 = arith.constant 0 : i32
    %c0_i32_0 = arith.constant 0 : i32
    return %arg0, %c0_i32 : i32, i32
  }
  func.func @transform_1(%arg0: i32) -> (i32, i32) {
    %c0_i32 = arith.constant 0 : i32
    %c0_i32_0 = arith.constant 0 : i32
    return %arg0, %c0_i32 : i32, i32
  }
  func.func @transform_2(%arg0: i32) -> (i32, i32) {
    %c0_i32 = arith.constant 0 : i32
    %c0_i32_0 = arith.constant 0 : i32
    return %arg0, %c0_i32 : i32, i32
  }
  func.func @transform_3(%arg0: i32) -> (i32, i32) {
    %c0_i32 = arith.constant 0 : i32
    %c0_i32_0 = arith.constant 0 : i32
    return %arg0, %c0_i32 : i32, i32
  }
}

</mosaic_0001>

<llo_original>
// kernel: dummy_model_forward.1
$region0: #{dummy_model_forward.1}
  #allocation0 [shape = 'u32[]', space=smem, size = 0x4, offset = 0x4, fixed_abs, tag = 'smem constant byte address 0x4 - core index']
  #allocation1 [shape = 'u32[144,128]{1,0:T(1,128)}', space=vmem, size = 0x12000, scoped, tag = 'internal scratch']
  %s0 = inlined_call_operand.vmem [shape: f32[8,1], index: 0, kind: input, shape index: {}]
  %s1 = inlined_call_operand.vmem [shape: f32[8,1], index: 1, kind: input, shape index: {}]
  %s2 = inlined_call_operand.vmem [shape: f32[8,256], index: 2, kind: input, shape index: {}]
  %s3 = inlined_call_operand.vmem [shape: f32[8,256], index: 3, kind: output, shape index: {}]
  %s4 = sld [smem:[#allocation0]]
  $region22: #{dummy_model_forward.1} parent=0
    _
  %s6 = ssub.s32 1, %s4
  %s7 = scalar_select 0, %s6, %s4
  // Predicated region
  $region2: #{dummy_model_forward.1} parent=0 // pred_check
    _
  $region3: #{dummy_model_forward.1} parent=0 // pred_check_branch
    %9 = sbr.rel (0) target = $region5
  $region4: #{dummy_model_forward.1} parent=0 // pred_region
    _
  $region5: #{dummy_model_forward.1} parent=0 // pred_fallthru
    _
  // Predicated region
  $region6: #{dummy_model_forward.1} parent=0 // pred_check
    _
  $region7: #{dummy_model_forward.1} parent=0 // pred_check_branch
    %11 = sbr.rel (0) target = $region9
  $region8: #{dummy_model_forward.1} parent=0 // pred_region
    _
  $region9: #{dummy_model_forward.1} parent=0 // pred_fallthru
    _
  // Predicated region
  $region10: #{dummy_model_forward.1} parent=0 // pred_check
    _
  $region11: #{dummy_model_forward.1} parent=0 // pred_check_branch
    %13 = sbr.rel (0) target = $region13
  $region12: #{dummy_model_forward.1} parent=0 // pred_region
    _
  $region13: #{dummy_model_forward.1} parent=0 // pred_fallthru
    _
  %v14 = vld [vmem:[%s2] sm:$0xff]
  %v15 = vld [vmem:[%s2 + $0x8] sm:$0xff]
  %v16 = vadd.f32 %v14, %v15
  %17 = vadd.xlane.f32.xlu0 %v16
  %v18 = vpop.xlane.xlu0 %17
  %v19 = vld [vmem:[%s0] sm:$0xff]
  %21 = vset.pattern.permute.xlu0 0
  %22 = vperm.xlu0 %21, %v19
  %v23 = vpop.permute.xlu0 %22
  %v25 = vmul.f32 %v23, %v14
  %v26 = vmul.f32 %v23, %v15
  %v27 = vld [vmem:[%s1] sm:$0xff]
  %v28 = vmul.f32 %v27, %v18
  %30 = vset.pattern.permute.xlu0 0
  %31 = vperm.xlu0 %30, %v28
  %v32 = vpop.permute.xlu0 %31
  %v34 = vadd.f32 %v25, %v32
  %v35 = vadd.f32 %v26, %v32
  %36 = vst [vmem:[%s3] sm:$0xff] %v34
  %37 = vst [vmem:[%s3 + $0x8] sm:$0xff] %v35
  // Predicated region
  $region14: #{dummy_model_forward.1} parent=0 // pred_check
    _
  $region15: #{dummy_model_forward.1} parent=0 // pred_check_branch
    %39 = sbr.rel (0) target = $region17
  $region16: #{dummy_model_forward.1} parent=0 // pred_region
    _
  $region17: #{dummy_model_forward.1} parent=0 // pred_fallthru
    _
  // Predicated region
  $region18: #{dummy_model_forward.1} parent=0 // pred_check
    _
  $region19: #{dummy_model_forward.1} parent=0 // pred_check_branch
    %41 = sbr.rel (0) target = $region21
  $region20: #{dummy_model_forward.1} parent=0 // pred_region
    _
  $region21: #{dummy_model_forward.1} parent=0 // pred_fallthru
    _

</llo_original>
